<compile_context>
chip_gen: v7x
topology: tpu7x:2x2x1
jax: 0.10.0
libtpu: 0.0.40
codegen_flags: <defaults>
</compile_context>

<pallas_src>
import functools

import jax
import jax.numpy as jnp
from jax import lax
from jax.experimental import pallas as pl
from jax.experimental.pallas import tpu as pltpu

EPS = 1e-12


def _sum_all(x):
    """Reduce a 2-D f32 tile to shape (1, 1): sublane reduce, then lane reduce."""
    return jnp.sum(jnp.sum(x, axis=0, keepdims=True), axis=1, keepdims=True)


def _gln_kernel(x_ref, gamma_ref, beta_ref, o_ref, sum_acc, sq_acc, *, inv_n, eps):
    # grid = (B, 2, nT): batch (parallel), phase (stats / normalize), S tiles.
    # x_ref:     (1, C, Ts)     gamma_ref / beta_ref: (C, 1)     o_ref: (1, C, Ts)
    # sum_acc / sq_acc: (1, 1) f32 VMEM scratch, persistent across grid steps.
    p = pl.program_id(1)
    t = pl.program_id(2)

    x = x_ref[0].astype(jnp.float32)  # (C, Ts)

    @pl.when(jnp.logical_and(p == 0, t == 0))
    def _():
        sum_acc[...] = jnp.zeros_like(sum_acc)
        sq_acc[...] = jnp.zeros_like(sq_acc)

    @pl.when(p == 0)
    def _():
        # Phase 0: accumulate sum(x) and sum(x^2) over the whole (C, S) slab.
        sum_acc[...] += _sum_all(x)
        sq_acc[...] += _sum_all(x * x)

    @pl.when(p == 1)
    def _():
        # Phase 1: stats are final; normalize this tile with one FMA/element.
        mean = sum_acc[...] * inv_n                          # (1, 1)
        var = sq_acc[...] * inv_n - mean * mean              # (1, 1)
        inv_std = lax.rsqrt(jnp.maximum(var, 0.0) + eps)     # EUP rsqrt, no divide
        gamma = gamma_ref[...].astype(jnp.float32)           # (C, 1)
        beta = beta_ref[...].astype(jnp.float32)             # (C, 1)
        scale = gamma * inv_std                              # (C, 1)
        shift = beta - mean * scale                          # (C, 1)
        o_ref[0] = (x * scale + shift).astype(o_ref.dtype)


def _pick_tile(s, max_tile):
    """Largest multiple of 128 that divides s and is <= max_tile; else full extent."""
    if s % 128 == 0:
        cand = max_tile - (max_tile % 128)
        while cand >= 128:
            if s % cand == 0:
                return cand
            cand -= 128
        return 128
    return s  # full-extent block (always legal for the BlockSpec rule)


def global_layer_norm(x, gamma, beta, *, eps=EPS, max_tile=1024):
    """x: (B, C, *spatial); gamma/beta: (C,). Returns array of x.shape."""
    orig_shape = x.shape
    B, C = orig_shape[0], orig_shape[1]
    S = 1
    for d in orig_shape[2:]:
        S *= d

    x3 = x.reshape(B, C, S)
    g = gamma.reshape(C, 1)
    b_ = beta.reshape(C, 1)

    ts = _pick_tile(S, max_tile)
    n_t = S // ts
    inv_n = 1.0 / float(C * S)

    kernel = functools.partial(_gln_kernel, inv_n=inv_n, eps=float(eps))

    out = pl.pallas_call(
        kernel,
        out_shape=jax.ShapeDtypeStruct((B, C, S), x.dtype),
        grid_spec=pltpu.PrefetchScalarGridSpec(
            num_scalar_prefetch=0,
            grid=(B, 2, n_t),
            in_specs=[
                pl.BlockSpec((1, C, ts), lambda b, p, t: (b, 0, t)),
                pl.BlockSpec((C, 1), lambda b, p, t: (0, 0)),
                pl.BlockSpec((C, 1), lambda b, p, t: (0, 0)),
            ],
            # Phase 0 parks the output window on tile 0 (never written);
            # phase 1 walks the tiles and writes each block exactly once.
            out_specs=pl.BlockSpec((1, C, ts), lambda b, p, t: (b, 0, t * p)),
            scratch_shapes=[
                pltpu.VMEM((1, 1), jnp.float32),  # running sum(x)
                pltpu.VMEM((1, 1), jnp.float32),  # running sum(x^2)
            ],
        ),
        compiler_params=pltpu.CompilerParams(
            dimension_semantics=("parallel", "arbitrary", "arbitrary")),
    )(x3, g, b_)
    return out.reshape(orig_shape)


def _reference(x, gamma, beta, eps=EPS):
    """Pure-JAX reference mirroring nn.GroupNorm(1, C, eps) forward."""
    B, C = x.shape[0], x.shape[1]
    xf = x.reshape(B, -1).astype(jnp.float32)
    mean = jnp.mean(xf, axis=1)
    var = jnp.mean((xf - mean[:, None]) ** 2, axis=1)
    bshape = (B,) + (1,) * (x.ndim - 1)
    mean = mean.reshape(bshape)
    var = var.reshape(bshape)
    pshape = (1, C) + (1,) * (x.ndim - 2)
    g = gamma.reshape(pshape)
    b = beta.reshape(pshape)
    xn = (x.astype(jnp.float32) - mean) * lax.rsqrt(var + eps)
    return (xn * g + b).astype(x.dtype)


if __name__ == "__main__":
    key = jax.random.PRNGKey(0)
    B, C, H, W = 2, 4, 16, 16
    x = jax.random.normal(key, (B, C, H, W), dtype=jnp.float32)

    # Default GroupNorm affine init (weight=1, bias=0), single S tile.
    gamma = jnp.ones((C,), jnp.float32)
    beta = jnp.zeros((C,), jnp.float32)
    out = global_layer_norm(x, gamma, beta)
    out = jax.block_until_ready(out)
    ref = _reference(x, gamma, beta)
    assert out.shape == x.shape
    assert jnp.allclose(out, ref, atol=1e-5, rtol=1e-5), "mismatch (default affine)"

    # Non-trivial affine params + smaller tile cap so the multi-tile
    # (n_t > 1) stats-accumulation path is exercised.
    gamma2 = jnp.linspace(0.5, 1.5, C, dtype=jnp.float32)
    beta2 = jnp.linspace(-0.2, 0.2, C, dtype=jnp.float32)
    out2 = global_layer_norm(x, gamma2, beta2, max_tile=128)
    out2 = jax.block_until_ready(out2)
    ref2 = _reference(x, gamma2, beta2)
    assert jnp.allclose(out2, ref2, atol=1e-5, rtol=1e-5), "mismatch (tiled path)"

    print("KERNEL_OK")
</pallas_src>

<mosaic_0001>
module attributes {stable_mosaic.version = 11 : i64} {
  func.func @_gln_kernel(%arg0: i32, %arg1: i32, %arg2: i32, %arg3: memref<1x4x256xf32, #tpu.memory_space<vmem>>, %arg4: memref<4x1xf32, #tpu.memory_space<vmem>>, %arg5: memref<4x1xf32, #tpu.memory_space<vmem>>, %arg6: memref<1x4x256xf32, #tpu.memory_space<vmem>>, %arg7: memref<1x1xf32, #tpu.memory_space<vmem>>, %arg8: memref<1x1xf32, #tpu.memory_space<vmem>>) attributes {dimension_semantics = [#tpu.dimension_semantics<parallel>, #tpu.dimension_semantics<arbitrary>, #tpu.dimension_semantics<arbitrary>], iteration_bounds = array<i64: 2, 2, 1>, scalar_prefetch = 0 : i64, scratch_operands = 2 : i64, tpu.core_type = #tpu.core_type<tc>, window_params = [{transform_indices = @transform_0, window_bounds = array<i64: 1, 4, 256>}, {pipeline_mode = #tpu.pipeline_mode<synchronous>, transform_indices = @transform_1, window_bounds = array<i64: 4, 1>}, {pipeline_mode = #tpu.pipeline_mode<synchronous>, transform_indices = @transform_2, window_bounds = array<i64: 4, 1>}, {transform_indices = @transform_3, window_bounds = array<i64: 1, 4, 256>}]} {
    %c0 = arith.constant 0 : index
    %c0_0 = arith.constant 0 : index
    %c0_1 = arith.constant 0 : index
    %0 = vector.load %arg3[%c0, %c0_0, %c0_1] : memref<1x4x256xf32, #tpu.memory_space<vmem>>, vector<1x4x256xf32>
    %1 = vector.shape_cast %0 : vector<1x4x256xf32> to vector<4x256xf32>
    %c0_i32 = arith.constant 0 : i32
    %2 = arith.cmpi eq, %arg1, %c0_i32 : i32
    %c0_i32_2 = arith.constant 0 : i32
    %3 = arith.cmpi eq, %arg2, %c0_i32_2 : i32
    %4 = arith.andi %2, %3 : i1
    %5 = arith.extui %4 : i1 to i32
    %c0_i32_3 = arith.constant 0 : i32
    %6 = arith.cmpi ne, %5, %c0_i32_3 : i32
    scf.if %6 {
      %cst = arith.constant 0.000000e+00 : f32
      %13 = vector.broadcast %cst : f32 to vector<1x1xf32>
      %c0_7 = arith.constant 0 : index
      %c0_8 = arith.constant 0 : index
      %14 = vector.load %arg7[%c0_7, %c0_8] : memref<1x1xf32, #tpu.memory_space<vmem>>, vector<1x1xf32>
      tpu.vector_store %arg7[%c0_7, %c0_8], %13 {strides = array<i32>} : memref<1x1xf32, #tpu.memory_space<vmem>>, vector<1x1xf32>,
      %cst_9 = arith.constant 0.000000e+00 : f32
      %15 = vector.broadcast %cst_9 : f32 to vector<1x1xf32>
      %c0_10 = arith.constant 0 : index
      %c0_11 = arith.constant 0 : index
      %16 = vector.load %arg8[%c0_10, %c0_11] : memref<1x1xf32, #tpu.memory_space<vmem>>, vector<1x1xf32>
      tpu.vector_store %arg8[%c0_10, %c0_11], %15 {strides = array<i32>} : memref<1x1xf32, #tpu.memory_space<vmem>>, vector<1x1xf32>,
    } else {
    }
    %c0_i32_4 = arith.constant 0 : i32
    %7 = arith.cmpi eq, %arg1, %c0_i32_4 : i32
    %8 = arith.extui %7 : i1 to i32
    %c0_i32_5 = arith.constant 0 : i32
    %9 = arith.cmpi ne, %8, %c0_i32_5 : i32
    scf.if %9 {
      %c0_7 = arith.constant 0 : index
      %c0_8 = arith.constant 0 : index
      %13 = vector.load %arg7[%c0_7, %c0_8] : memref<1x1xf32, #tpu.memory_space<vmem>>, vector<1x1xf32>
      %cst = arith.constant dense<0.000000e+00> : vector<256xf32>
      %14 = vector.multi_reduction <add>, %1, %cst [0] : vector<4x256xf32> to vector<256xf32>
      %15 = vector.shape_cast %14 : vector<256xf32> to vector<1x256xf32>
      %cst_9 = arith.constant dense<0.000000e+00> : vector<1xf32>
      %16 = vector.multi_reduction <add>, %15, %cst_9 [1] : vector<1x256xf32> to vector<1xf32>
      %17 = vector.shape_cast %16 : vector<1xf32> to vector<1x1xf32>
      %18 = arith.addf %13, %17 : vector<1x1xf32>
      %c0_10 = arith.constant 0 : index
      %c0_11 = arith.constant 0 : index
      %19 = vector.load %arg7[%c0_10, %c0_11] : memref<1x1xf32, #tpu.memory_space<vmem>>, vector<1x1xf32>
      tpu.vector_store %arg7[%c0_10, %c0_11], %18 {strides = array<i32>} : memref<1x1xf32, #tpu.memory_space<vmem>>, vector<1x1xf32>,
      %c0_12 = arith.constant 0 : index
      %c0_13 = arith.constant 0 : index
      %20 = vector.load %arg8[%c0_12, %c0_13] : memref<1x1xf32, #tpu.memory_space<vmem>>, vector<1x1xf32>
      %21 = arith.mulf %1, %1 : vector<4x256xf32>
      %cst_14 = arith.constant dense<0.000000e+00> : vector<256xf32>
      %22 = vector.multi_reduction <add>, %21, %cst_14 [0] : vector<4x256xf32> to vector<256xf32>
      %23 = vector.shape_cast %22 : vector<256xf32> to vector<1x256xf32>
      %cst_15 = arith.constant dense<0.000000e+00> : vector<1xf32>
      %24 = vector.multi_reduction <add>, %23, %cst_15 [1] : vector<1x256xf32> to vector<1xf32>
      %25 = vector.shape_cast %24 : vector<1xf32> to vector<1x1xf32>
      %26 = arith.addf %20, %25 : vector<1x1xf32>
      %c0_16 = arith.constant 0 : index
      %c0_17 = arith.constant 0 : index
      %27 = vector.load %arg8[%c0_16, %c0_17] : memref<1x1xf32, #tpu.memory_space<vmem>>, vector<1x1xf32>
      tpu.vector_store %arg8[%c0_16, %c0_17], %26 {strides = array<i32>} : memref<1x1xf32, #tpu.memory_space<vmem>>, vector<1x1xf32>,
    } else {
    }
    %c1_i32 = arith.constant 1 : i32
    %10 = arith.cmpi eq, %arg1, %c1_i32 : i32
    %11 = arith.extui %10 : i1 to i32
    %c0_i32_6 = arith.constant 0 : i32
    %12 = arith.cmpi ne, %11, %c0_i32_6 : i32
    scf.if %12 {
      %c0_7 = arith.constant 0 : index
      %c0_8 = arith.constant 0 : index
      %13 = vector.load %arg7[%c0_7, %c0_8] : memref<1x1xf32, #tpu.memory_space<vmem>>, vector<1x1xf32>
      %cst = arith.constant 9.765625E-4 : f32
      %14 = vector.broadcast %cst : f32 to vector<1x1xf32>
      %15 = arith.mulf %13, %14 : vector<1x1xf32>
      %c0_9 = arith.constant 0 : index
      %c0_10 = arith.constant 0 : index
      %16 = vector.load %arg8[%c0_9, %c0_10] : memref<1x1xf32, #tpu.memory_space<vmem>>, vector<1x1xf32>
      %cst_11 = arith.constant 9.765625E-4 : f32
      %17 = vector.broadcast %cst_11 : f32 to vector<1x1xf32>
      %18 = arith.mulf %16, %17 : vector<1x1xf32>
      %19 = arith.mulf %15, %15 : vector<1x1xf32>
      %20 = arith.subf %18, %19 : vector<1x1xf32>
      %cst_12 = arith.constant 0.000000e+00 : f32
      %21 = vector.broadcast %cst_12 : f32 to vector<1x1xf32>
      %22 = arith.maximumf %20, %21 : vector<1x1xf32>
      %cst_13 = arith.constant 9.99999996E-13 : f32
      %23 = vector.broadcast %cst_13 : f32 to vector<1x1xf32>
      %24 = arith.addf %22, %23 : vector<1x1xf32>
      %25 = math.rsqrt %24 : vector<1x1xf32>
      %c0_14 = arith.constant 0 : index
      %c0_15 = arith.constant 0 : index
      %26 = vector.load %arg4[%c0_14, %c0_15] : memref<4x1xf32, #tpu.memory_space<vmem>>, vector<4x1xf32>
      %c0_16 = arith.constant 0 : index
      %c0_17 = arith.constant 0 : index
      %27 = vector.load %arg5[%c0_16, %c0_17] : memref<4x1xf32, #tpu.memory_space<vmem>>, vector<4x1xf32>
      %28 = vector.broadcast %25 : vector<1x1xf32> to vector<4x1xf32>
      %29 = arith.mulf %26, %28 : vector<4x1xf32>
      %30 = vector.broadcast %15 : vector<1x1xf32> to vector<4x1xf32>
      %31 = arith.mulf %30, %29 : vector<4x1xf32>
      %32 = arith.subf %27, %31 : vector<4x1xf32>
      %33 = vector.broadcast %29 : vector<4x1xf32> to vector<4x256xf32>
      %34 = arith.mulf %1, %33 : vector<4x256xf32>
      %35 = vector.broadcast %32 : vector<4x1xf32> to vector<4x256xf32>
      %36 = arith.addf %34, %35 : vector<4x256xf32>
      %c0_18 = arith.constant 0 : index
      %c0_19 = arith.constant 0 : index
      %c0_20 = arith.constant 0 : index
      %37 = vector.load %arg6[%c0_18, %c0_19, %c0_20] : memref<1x4x256xf32, #tpu.memory_space<vmem>>, vector<1x4x256xf32>
      %38 = vector.shape_cast %37 : vector<1x4x256xf32> to vector<4x256xf32>
      %39 = vector.shape_cast %36 : vector<4x256xf32> to vector<1x4x256xf32>
      tpu.vector_store %arg6[%c0_18, %c0_19, %c0_20], %39 {strides = array<i32>} : memref<1x4x256xf32, #tpu.memory_space<vmem>>, vector<1x4x256xf32>,
    } else {
    }
    return
  }
  func.func @transform_0(%arg0: i32, %arg1: i32, %arg2: i32) -> (i32, i32, i32) {
    %c0_i32 = arith.constant 0 : i32
    %c0_i32_0 = arith.constant 0 : i32
    return %arg0, %c0_i32, %arg2 : i32, i32, i32
  }
  func.func @transform_1(%arg0: i32, %arg1: i32, %arg2: i32) -> (i32, i32) {
    %c0_i32 = arith.constant 0 : i32
    %c0_i32_0 = arith.constant 0 : i32
    %c0_i32_1 = arith.constant 0 : i32
    return %c0_i32, %c0_i32_0 : i32, i32
  }
  func.func @transform_2(%arg0: i32, %arg1: i32, %arg2: i32) -> (i32, i32) {
    %c0_i32 = arith.constant 0 : i32
    %c0_i32_0 = arith.constant 0 : i32
    %c0_i32_1 = arith.constant 0 : i32
    return %c0_i32, %c0_i32_0 : i32, i32
  }
  func.func @transform_3(%arg0: i32, %arg1: i32, %arg2: i32) -> (i32, i32, i32) {
    %0 = arith.muli %arg2, %arg1 : i32
    %c0_i32 = arith.constant 0 : i32
    %c0_i32_0 = arith.constant 0 : i32
    return %arg0, %c0_i32, %0 : i32, i32, i32
  }
}

</mosaic_0001>

<llo_original>
// kernel: tpu_custom_call.1
$region0: #{tpu_custom_call.1}
  #allocation0 [shape = 'u32[]', space=smem, size = 0x4, offset = 0x4, fixed_abs, tag = 'smem constant byte address 0x4 - core index']
  #allocation1 [shape = 'u32[144,128]{1,0:T(1,128)}', space=vmem, size = 0x12000, scoped, tag = 'internal scratch']
  #allocation2 [shape = 'f32[1,1]{1,0:T(1,128)}', space=vmem, size = 0x200, scoped, tag = 'scratch operand']
  #allocation3 [shape = 'f32[1,1]{1,0:T(1,128)}', space=vmem, size = 0x200, scoped, tag = 'scratch operand']
  %s0 = inlined_call_operand.hbm [shape: f32[2,4,256], index: 0, kind: input, shape index: {}]
  %s1 = inlined_call_operand.vmem [shape: f32[4,1], index: 1, kind: input, shape index: {}]
  %s2 = inlined_call_operand.vmem [shape: f32[4,1], index: 2, kind: input, shape index: {}]
  %s3 = inlined_call_operand.hbm [shape: f32[2,4,256], index: 3, kind: output, shape index: {}]
  %s4 = sld [smem:[#allocation0]]
  $region61: #{tpu_custom_call.1} parent=0
    _
  %s6 = ssub.s32 1, %s4
  %s7 = scalar_select 0, %s6, %s4
  $region1: #{tpu_custom_call.1} parent=0
    #allocation4 [shape = 'u8[8192]{0}', space=vmem, size = 0x2000, scoped, tag = 'input window, operand 0']
    #allocation5 [shape = 's32[2]{0}', space=sflag, size = 0x8, scoped, tag = 'scoped memory for tpu_custom_call.1']
    #allocation6 [shape = 's32[2]{0}', space=sflag, size = 0x8, scoped, tag = 'scoped memory for tpu_custom_call.1']
    #allocation7 [shape = 'u8[8192]{0}', space=vmem, size = 0x2000, scoped, tag = 'output window, operand 0']
    %8 = vsyncpa [#allocation5], 0
    %s9 = scalar_lea.sflag [#allocation5], 1
    %10 = vsyncpa %s9, 0
    %11 = vsyncpa [#allocation6], 0
    %s12 = scalar_lea.sflag [#allocation6], 1
    %13 = vsyncpa %s12, 0
    loop: start=0, step=1, limit=6
    $region2: #{tpu_custom_call.1} parent=1 // loop_pre_header
      _
    $region3: #{tpu_custom_call.1} parent=1 // loop_header
      %s15 = sphi 0, %s19
      %p16 = scmp.ge.s32.totalorder %s15, 6
      %s22 = sphi 0, %s41
      %s23 = sphi 0, %s37
      %s24 = sphi 0, %s33
      %s25 = sphi 0, %s22
      %s26 = sphi 0, %s23
      %s27 = sphi 0, %s24
      %s28 = sphi 0, %s25
      %s29 = sphi 0, %s26
      %s30 = sphi 0, %s27
      %s46 = sphi 0, %s48
      %s49 = sphi 0, %s46
      %s50 = sphi 0, %s49
      %s66 = sphi 0, %s50
      %s70 = sphi 0, %s70
      %s72 = sphi 0, %s70
      %s73 = sphi 0, %s72
      %s87 = sphi 0, %s73
      %s91 = sphi 0, %s91
      %s93 = sphi 0, %s91
      %s94 = sphi 0, %s93
      %s108 = sphi 0, %s94
      %s118 = sphi 0, %s120
      %s121 = sphi 0, %s118
      %s122 = sphi 0, %s121
      %s138 = sphi 0, %s122
    $region4: #{tpu_custom_call.1} parent=1 // loop_header_branch
      %18 = sbr.rel (%p16) target = $region8
    $region5: #{tpu_custom_call.1} parent=1 // loop_body
      %s20 = ssub.s32 %s15, 1
      %s21 = ssub.s32 %s15, 2
      %s31 = sadd.s32 1, %s24
      %p32 = scmp.ge.s32.totalorder %s31, 1
      %s33 = scalar_select %p32, 0, %s31
      %s34 = sadd.s32 1, %s23
      %s35 = scalar_select %p32, %s34, %s23
      %p36 = scmp.ge.s32.totalorder %s35, 2
      %s37 = scalar_select %p36, 0, %s35
      %s38 = sadd.s32 1, %s22
      %s39 = scalar_select %p36, %s38, %s22
      %p40 = scmp.ge.s32.totalorder %s39, 2
      %s41 = scalar_select %p40, 0, %s39
      %s42 = ssub.s32 %s22, %s41
      %s43 = ssub.s32 %s24, %s33
      %s44 = sor.u32 %s42, %s43
      %p45 = scmp.eq.s32.totalorder %s44, 0
      %s47 = sadd.s32 %s46, 1
      %s48 = scalar_select %p45, %s46, %s47
      %p51 = pneg %p45
      %p52 = scmp.eq.s32.totalorder %s15, 3
      %p53 = por %p51, %p52
      %p54 = scmp.ne.s32.totalorder %s46, %s49
      %p55 = scmp.eq.s32.totalorder %s15, 0
      %p56 = por %p54, %p55
      %p57 = scmp.ne.s32.totalorder %s46, %s49
      %p58 = scmp.eq.s32.totalorder %s20, 3
      %p59 = por %p57, %p58
      %p60 = scmp.ne.s32.totalorder %s49, %s50
      %p61 = scmp.eq.s32.totalorder %s20, 0
      %p62 = por %p60, %p61
      %p63 = scmp.ne.s32.totalorder %s49, %s50
      %p64 = scmp.eq.s32.totalorder %s21, 3
      %p65 = por %p63, %p64
      %p67 = scmp.ne.s32.totalorder %s50, %s66
      %p68 = scmp.eq.s32.totalorder %s21, 0
      %p69 = por %p67, %p68
      %s71 = sadd.s32 %s70, 1
      %p74 = scmp.eq.s32.totalorder %s15, 3
      %p75 = scmp.ne.s32.totalorder %s70, %s72
      %p76 = scmp.eq.s32.totalorder %s15, 0
      %p77 = por %p75, %p76
      %p78 = scmp.ne.s32.totalorder %s70, %s72
      %p79 = scmp.eq.s32.totalorder %s20, 3
      %p80 = por %p78, %p79
      %p81 = scmp.ne.s32.totalorder %s72, %s73
      %p82 = scmp.eq.s32.totalorder %s20, 0
      %p83 = por %p81, %p82
      %p84 = scmp.ne.s32.totalorder %s72, %s73
      %p85 = scmp.eq.s32.totalorder %s21, 3
      %p86 = por %p84, %p85
      %p88 = scmp.ne.s32.totalorder %s73, %s87
      %p89 = scmp.eq.s32.totalorder %s21, 0
      %p90 = por %p88, %p89
      %s92 = sadd.s32 %s91, 1
      %p95 = scmp.eq.s32.totalorder %s15, 3
      %p96 = scmp.ne.s32.totalorder %s91, %s93
      %p97 = scmp.eq.s32.totalorder %s15, 0
      %p98 = por %p96, %p97
      %p99 = scmp.ne.s32.totalorder %s91, %s93
      %p100 = scmp.eq.s32.totalorder %s20, 3
      %p101 = por %p99, %p100
      %p102 = scmp.ne.s32.totalorder %s93, %s94
      %p103 = scmp.eq.s32.totalorder %s20, 0
      %p104 = por %p102, %p103
      %p105 = scmp.ne.s32.totalorder %s93, %s94
      %p106 = scmp.eq.s32.totalorder %s21, 3
      %p107 = por %p105, %p106
      %p109 = scmp.ne.s32.totalorder %s94, %s108
      %p110 = scmp.eq.s32.totalorder %s21, 0
      %p111 = por %p109, %p110
      %s112 = smul.u32 %s24, %s23
      %s113 = smul.u32 %s33, %s37
      %s114 = ssub.s32 %s22, %s41
      %s115 = ssub.s32 %s112, %s113
      %s116 = sor.u32 %s114, %s115
      %p117 = scmp.eq.s32.totalorder %s116, 0
      %s119 = sadd.s32 %s118, 1
      %s120 = scalar_select %p117, %s118, %s119
      %p123 = pneg %p117
      %p124 = scmp.eq.s32.totalorder %s15, 3
      %p125 = por %p123, %p124
      %p126 = scmp.ne.s32.totalorder %s118, %s121
      %p127 = scmp.eq.s32.totalorder %s15, 0
      %p128 = por %p126, %p127
      %p129 = scmp.ne.s32.totalorder %s118, %s121
      %p130 = scmp.eq.s32.totalorder %s20, 3
      %p131 = por %p129, %p130
      %p132 = scmp.ne.s32.totalorder %s121, %s122
      %p133 = scmp.eq.s32.totalorder %s20, 0
      %p134 = por %p132, %p133
      %p135 = scmp.ne.s32.totalorder %s121, %s122
      %p136 = scmp.eq.s32.totalorder %s21, 3
      %p137 = por %p135, %p136
      %p139 = scmp.ne.s32.totalorder %s122, %s138
      %p140 = scmp.eq.s32.totalorder %s21, 0
      %p141 = por %p139, %p140
      %p142 = scmp.le.s32.totalorder 1, %s15
      %p143 = scmp.lt.s32.totalorder %s15, 5
      %p144 = pnand %p142, %p143
      %p145 = pneg %p144
      // Predicated region
      $region9: #{tpu_custom_call.1} parent=5 // pred_check
        _
      $region10: #{tpu_custom_call.1} parent=5 // pred_check_branch
        %147 = sbr.rel (%p144) target = $region12
      $region11: #{tpu_custom_call.1} parent=5 // pred_region
        %s148 = ssub.s32 %s15, 1
        // Predicated region
        $region13: #{tpu_custom_call.1} parent=11 // pred_check
          %p149 = pneg %p83
        $region14: #{tpu_custom_call.1} parent=11 // pred_check_branch
          %151 = sbr.rel (%p149) target = $region16
        $region15: #{tpu_custom_call.1} parent=11 // pred_region
          _
        $region16: #{tpu_custom_call.1} parent=11 // pred_fallthru
          _
        // Predicated region
        $region17: #{tpu_custom_call.1} parent=11 // pred_check
          %p152 = pneg %p104
        $region18: #{tpu_custom_call.1} parent=11 // pred_check_branch
          %154 = sbr.rel (%p152) target = $region20
        $region19: #{tpu_custom_call.1} parent=11 // pred_region
          _
        $region20: #{tpu_custom_call.1} parent=11 // pred_fallthru
          _
      $region12: #{tpu_custom_call.1} parent=5 // pred_fallthru
        _
      %p155 = scmp.lt.s32.totalorder %s15, 4
      // Predicated region
      $region21: #{tpu_custom_call.1} parent=5 // pred_check
        %p156 = pneg %p155
      $region22: #{tpu_custom_call.1} parent=5 // pred_check_branch
        %158 = sbr.rel (%p156) target = $region24
      $region23: #{tpu_custom_call.1} parent=5 // pred_region
        // Predicated region
        $region25: #{tpu_custom_call.1} parent=23 // pred_check
          %p159 = pneg %p56
        $region26: #{tpu_custom_call.1} parent=23 // pred_check_branch
          %161 = sbr.rel (%p159) target = $region28
        $region27: #{tpu_custom_call.1} parent=23 // pred_region
          %s162 = sand.u32 %s46, 1
          %s163 = scalar_lea.sflag [#allocation5], %s162
          %s164 = sand.u32 %s46, 1
          %s165 = smul.addr %s164, 8
          %s166 = scalar_lea.vmem [#allocation4], %s165
          %s167 = smul.u32 2, %s24
          %s169 = ssub.s32 128, 128
          %170 = vsyncadd %s163, %s169
          %s171 = smul.addr %s22, 2
          %s172 = sadd.s32 %s167, %s171
          %s173 = smul.addr %s172, 64
          %s174 = scalar_lea.hbm %s0, %s173
          %s176 = sshll.u32 %s166, 4
          %s177 = int_to_ptr.vmem [resolvable:$true] %s176
          %179 = dma.hbm_to_vmem [thread:$0]  %s174, 128, %s177, %s163
        $region28: #{tpu_custom_call.1} parent=23 // pred_fallthru
          _
      $region24: #{tpu_custom_call.1} parent=5 // pred_fallthru
        _
      %p180 = scmp.le.s32.totalorder 1, %s15
      %p181 = scmp.lt.s32.totalorder %s15, 5
      %p182 = pnand %p180, %p181
      %p183 = pneg %p182
      // Predicated region
      $region29: #{tpu_custom_call.1} parent=5 // pred_check
        _
      $region30: #{tpu_custom_call.1} parent=5 // pred_check_branch
        %185 = sbr.rel (%p182) target = $region32
      $region31: #{tpu_custom_call.1} parent=5 // pred_region
        %s186 = ssub.s32 %s15, 1
        %s187 = sand.u32 %s49, 1
        %s188 = scalar_lea.sflag [#allocation5], %s187
        %s189 = sand.u32 %s49, 1
        %s190 = smul.addr %s189, 8
        %s191 = scalar_lea.vmem [#allocation4], %s190
        // Predicated region
        $region33: #{tpu_custom_call.1} parent=31 // pred_check
          %p192 = pneg %p62
        $region34: #{tpu_custom_call.1} parent=31 // pred_check_branch
          %194 = sbr.rel (%p192) target = $region36
        $region35: #{tpu_custom_call.1} parent=31 // pred_region
          %195 = dma.done %s188, 128
        $region36: #{tpu_custom_call.1} parent=31 // pred_fallthru
          _
        %s196 = sand.u32 %s49, 1
        %s197 = scalar_lea.sflag [#allocation5], %s196
        %s198 = sand.u32 %s49, 1
        %s199 = smul.addr %s198, 8
        %s200 = scalar_lea.vmem [#allocation4], %s199
        %p201 = pneg %p62
        %p202 = pneg %p59
        %p203 = pneg %p83
        %p204 = pneg %p80
        %p205 = pneg %p104
        %p206 = pneg %p101
        %p207 = pneg %p134
        %p208 = pneg %p131
        %s209 = sand.u32 %s121, 1
        %s210 = scalar_lea.sflag [#allocation6], %s209
        %s211 = sand.u32 %s121, 1
        %s212 = smul.addr %s211, 8
        %s213 = scalar_lea.vmem [#allocation7], %s212
        %s214 = smul.u32 2, %s27
        %s215 = smul.u32 %s27, %s26
        %s216 = smul.u32 2, %s215
        %v217 = vld [vmem:[%s191] sm:$0xff]
        %p218 = scmp.eq.s32.totalorder %s26, 0
        %p219 = scmp.eq.s32.totalorder %s27, 0
        %p220 = pnand %p218, %p219
        %p221 = pneg %p220
        // Predicated region
        $region37: #{tpu_custom_call.1} parent=31 // pred_check
          _
        $region38: #{tpu_custom_call.1} parent=31 // pred_check_branch
          %223 = sbr.rel (%p220) target = $region40
        $region39: #{tpu_custom_call.1} parent=31 // pred_region
          %vm224 = vcmask 0
          %225 = vst.msk [vmem:[#allocation2] sm:$0x1] %vm224, 0.0
          %226 = vst.msk [vmem:[#allocation3] sm:$0x1] %vm224, 0.0
        $region40: #{tpu_custom_call.1} parent=31 // pred_fallthru
          _
        // Predicated region
        $region41: #{tpu_custom_call.1} parent=31 // pred_check
          %p227 = pneg %p218
        $region42: #{tpu_custom_call.1} parent=31 // pred_check_branch
          %229 = sbr.rel (%p227) target = $region44
        $region43: #{tpu_custom_call.1} parent=31 // pred_region
          %v230 = vld [vmem:[#allocation2] sm:$0x1]
          %v232 = vcombine.high %v217, %v217
          %vm234 = vcmask 1043456
          %v235 = vsel %vm234, %v217, 0.0
          %v236 = vrot.slane %v235, 4
          %v237 = vadd.f32 %v235, %v236
          %v238 = vrot.slane %v237, 2
          %v239 = vadd.f32 %v237, %v238
          %v240 = vrot.slane %v239, 1
          %v241 = vadd.f32 %v239, %v240
          %v242 = vsel %vm234, %v232, 0.0
          %v243 = vrot.slane %v242, 4
          %v244 = vadd.f32 %v242, %v243
          %v245 = vrot.slane %v244, 2
          %v246 = vadd.f32 %v244, %v245
          %v247 = vrot.slane %v246, 1
          %v248 = vadd.f32 %v246, %v247
          %v249 = vadd.f32 %v241, %v248
          %250 = vadd.xlane.f32.xlu0 %v249
          %v251 = vpop.xlane.xlu0 %250
          %v252 = vadd.f32 %v230, %v251
          %vm253 = vcmask 0
          %254 = vst.msk [vmem:[#allocation2] sm:$0x1] %vm253, %v252
          %v255 = vld [vmem:[#allocation3] sm:$0x1]
          %v256 = vmul.f32 %v217, %v217
          %v258 = vcombine.high %v256, %v256
          %v260 = vsel %vm234, %v256, 0.0
          %v261 = vrot.slane %v260, 4
          %v262 = vadd.f32 %v260, %v261
          %v263 = vrot.slane %v262, 2
          %v264 = vadd.f32 %v262, %v263
          %v265 = vrot.slane %v264, 1
          %v266 = vadd.f32 %v264, %v265
          %v267 = vsel %vm234, %v258, 0.0
          %v268 = vrot.slane %v267, 4
          %v269 = vadd.f32 %v267, %v268
          %v270 = vrot.slane %v269, 2
          %v271 = vadd.f32 %v269, %v270
          %v272 = vrot.slane %v271, 1
          %v273 = vadd.f32 %v271, %v272
          %v274 = vadd.f32 %v266, %v273
          %275 = vadd.xlane.f32.xlu0 %v274
          %v276 = vpop.xlane.xlu0 %275
          %v277 = vadd.f32 %v255, %v276
          %278 = vst.msk [vmem:[#allocation3] sm:$0x1] %vm253, %v277
        $region44: #{tpu_custom_call.1} parent=31 // pred_fallthru
          _
        %p279 = scmp.eq.s32.totalorder %s26, 1
        // Predicated region
        $region45: #{tpu_custom_call.1} parent=31 // pred_check
          %p280 = pneg %p279
        $region46: #{tpu_custom_call.1} parent=31 // pred_check_branch
          %282 = sbr.rel (%p280) target = $region48
        $region47: #{tpu_custom_call.1} parent=31 // pred_region
          %v283 = vld [vmem:[#allocation2] sm:$0x1]
          %v284 = vmul.f32 %v283, 0.0009765625
          %v285 = vld [vmem:[#allocation3] sm:$0x1]
          %v286 = vmul.f32 %v285, 0.0009765625
          %v287 = vmul.f32 %v284, %v284
          %v288 = vsub.f32 %v286, %v287
          %v289 = vmax.f32 %v288, 0.0
          %v290 = vadd.f32 %v289, 1e-12
          %v291 = vrsqrt.pop %v290
          %v292 = vld [vmem:[%s1] sm:$0xf]
          %v293 = vld [vmem:[%s2] sm:$0xf]
          %v295 = vlaneseq
          %v296 = vshrl.u32 %v295, 7
          %v297 = vsub.s32 0, %v296
          %v298 = vrot.slane %v291, %v297
          %v300 = vmul.f32 %v292, %v298
          %v302 = vlaneseq
          %v303 = vshrl.u32 %v302, 7
          %v304 = vsub.s32 0, %v303
          %v305 = vrot.slane %v284, %v304
          %v307 = vmul.f32 %v305, %v300
          %v308 = vsub.f32 %v293, %v307
          %310 = vset.pattern.permute.xlu0 0
          %311 = vperm.xlu0 %310, %v300
          %v312 = vpop.permute.xlu0 %311
          %v314 = vunpack.c.l.s4 839922192
          %v315 = vunpack.c.0.s8 %v314
          %v316 = vlaneseq
          %v317 = vshrl.u32 %v316, 7
          %v318 = vsub.s32 %v315, %v317
          %v319 = vrot.slane %v312, %v318
          %v321 = vmul.f32 %v217, %v319
          %323 = vset.pattern.permute.xlu0 0
          %324 = vperm.xlu0 %323, %v308
          %v325 = vpop.permute.xlu0 %324
          %v327 = vunpack.c.l.s4 839922192
          %v328 = vunpack.c.0.s8 %v327
          %v329 = vlaneseq
          %v330 = vshrl.u32 %v329, 7
          %v331 = vsub.s32 %v328, %v330
          %v332 = vrot.slane %v325, %v331
          %v334 = vadd.f32 %v321, %v332
          %335 = vst [vmem:[%s213] sm:$0xff] %v334
        $region48: #{tpu_custom_call.1} parent=31 // pred_fallthru
          _
        %s336 = sand.u32 %s121, 1
        %s337 = scalar_lea.sflag [#allocation6], %s336
        %s338 = sand.u32 %s121, 1
        %s339 = smul.addr %s338, 8
        %s340 = scalar_lea.vmem [#allocation7], %s339
        // Predicated region
        $region49: #{tpu_custom_call.1} parent=31 // pred_check
          %p341 = pneg %p131
        $region50: #{tpu_custom_call.1} parent=31 // pred_check_branch
          %343 = sbr.rel (%p341) target = $region52
        $region51: #{tpu_custom_call.1} parent=31 // pred_region
          %s344 = smul.u32 %s27, %s26
          %s345 = smul.u32 2, %s344
          %s347 = ssub.s32 128, 128
          %348 = vsyncadd %s337, %s347
          %s349 = smul.addr %s25, 2
          %s350 = sadd.s32 %s345, %s349
          %s351 = smul.addr %s350, 64
          %s352 = scalar_lea.hbm %s3, %s351
          %s354 = sshll.u32 %s340, 4
          %s355 = int_to_ptr.vmem [resolvable:$true] %s354
          %357 = dma.vmem_to_hbm [thread:$0]  %s355, 128, %s352, %s337
        $region52: #{tpu_custom_call.1} parent=31 // pred_fallthru
          _
      $region32: #{tpu_custom_call.1} parent=5 // pred_fallthru
        _
      %p358 = scmp.le.s32.totalorder 2, %s15
      // Predicated region
      $region53: #{tpu_custom_call.1} parent=5 // pred_check
        %p359 = pneg %p358
      $region54: #{tpu_custom_call.1} parent=5 // pred_check_branch
        %361 = sbr.rel (%p359) target = $region56
      $region55: #{tpu_custom_call.1} parent=5 // pred_region
        %s362 = ssub.s32 %s15, 2
        // Predicated region
        $region57: #{tpu_custom_call.1} parent=55 // pred_check
          %p363 = pneg %p137
        $region58: #{tpu_custom_call.1} parent=55 // pred_check_branch
          %365 = sbr.rel (%p363) target = $region60
        $region59: #{tpu_custom_call.1} parent=55 // pred_region
          %s366 = sand.u32 %s122, 1
          %s367 = scalar_lea.sflag [#allocation6], %s366
          %s368 = sand.u32 %s122, 1
          %s369 = smul.addr %s368, 8
          %s370 = scalar_lea.vmem [#allocation7], %s369
          %371 = dma.done %s367, 128
        $region60: #{tpu_custom_call.1} parent=55 // pred_fallthru
          _
      $region56: #{tpu_custom_call.1} parent=5 // pred_fallthru
        _
    $region6: #{tpu_custom_call.1} parent=1 // loop_footer
      %s19 = sadd.s32 1, %s15
    $region7: #{tpu_custom_call.1} parent=1 // loop_footer_branch
      %14 = sbr.rel target = $region3
    $region8: #{tpu_custom_call.1} parent=1 // loop_exit
      _
    %372 = vsyncpa [#allocation5], 1
    %s373 = scalar_lea.sflag [#allocation5], 1
    %374 = vsyncpa %s373, 1
    %375 = vsyncpa [#allocation6], 1
    %s376 = scalar_lea.sflag [#allocation6], 1
    %377 = vsyncpa %s376, 1

</llo_original>
